<compile_context>
chip_gen: v6e
topology: v6e:2x2x1
jax: 0.10.0
libtpu: 0.0.40
codegen_flags: <defaults>
</compile_context>

<pallas_src>
import jax
import jax.numpy as jnp
from jax.experimental import pallas as pl
from jax.experimental.pallas import tpu as pltpu


def _round_up(x, m):
    return (x + m - 1) // m * m


def _pick_tile(padded_dim, candidates):
    for c in candidates:
        if padded_dim % c == 0:
            return c
    return padded_dim


def _shift_cols(x, s):
    """out[:, j] = x[:, j + s], zero-filled where j + s falls outside the block."""
    if s == 0:
        return x
    fk = x.shape[1]
    rolled = pltpu.roll(x, shift=(-s) % fk, axis=1)  # rolled[:, j] = x[:, (j + s) % fk]
    col = jax.lax.broadcasted_iota(jnp.int32, x.shape, 1)
    if s > 0:
        return jnp.where(col >= fk - s, 0.0, rolled)
    return jnp.where(col < -s, 0.0, rolled)


def _make_norm_kernel(ks, pad):
    """res = (x - conv1d(x)) * (1/std), written in bf16. ks/pad are static."""

    def kernel(params_ref, x_ref, res_ref):
        x = x_ref[...].astype(jnp.float32)
        mean = params_ref[0] * _shift_cols(x, -pad)
        for t in range(1, ks):                       # static unroll (ks is tiny)
            mean = mean + params_ref[t] * _shift_cols(x, t - pad)
        mean = mean + params_ref[ks]                 # conv bias
        res_ref[...] = ((x - mean) * params_ref[ks + 1]).astype(res_ref.dtype)

    return kernel


def _matmul_kernel(res_ref, w_ref, b_ref, o_ref):
    """Tiled bf16 x bf16 -> f32 matmul; o_ref is the resident accumulator."""
    k = pl.program_id(2)

    @pl.when(k == 0)
    def _init():
        # Effective bias (linear bias + global mean) folded into the init value.
        o_ref[...] = jnp.broadcast_to(b_ref[...], o_ref.shape)

    o_ref[...] += jnp.dot(res_ref[...], w_ref[...],
                          preferred_element_type=jnp.float32)


def ma_forward(source, conv_w, conv_b, weight, bias, pred_len):
    """Pallas implementation of MA.forward.

    source: (B, seq_len, input_dim) float32
    conv_w: (ks,)   taps of the Conv1d(1, 1, ks) kernel (squeezed torch weight)
    conv_b: ()      Conv1d bias
    weight: (F_in, F_out) = transpose of torch nn.Linear.weight
    bias:   (F_out,)
    Returns (B, pred_len, input_dim).
    """
    B, seq_len, input_dim = source.shape
    F_in = seq_len * input_dim
    F_out = weight.shape[1]
    ks = conv_w.shape[0]
    pad = (ks - 1) // 2

    # Global scalar statistics (torch.std is unbiased => ddof=1). Scalar glue in JAX.
    src_mean = jnp.mean(source)
    inv_std = 1.0 / jnp.std(source, ddof=1)

    # SMEM scalar parameter pack: [conv taps..., conv bias, 1/std].
    params = jnp.concatenate([
        conv_w.astype(jnp.float32).reshape(ks),
        jnp.reshape(conv_b.astype(jnp.float32), (1,)),
        jnp.reshape(inv_std.astype(jnp.float32), (1,)),
    ])

    # ---- MXU / vreg aligned tiling (pad, tile, slice back). ----
    tm = min(_round_up(B, 16), 256)              # mult of 16: bf16 sublane packing
    B_pad = _round_up(B, tm)
    F_in_pad = _round_up(F_in, 128)
    F_out_pad = _round_up(F_out, 128)
    tk = _pick_tile(F_in_pad, (512, 256, 128))
    tn = _pick_tile(F_out_pad, (512, 256, 128))
    # v7x megacore occupancy: keep >=2 tiles on a parallel axis when possible.
    if B_pad // tm == 1 and F_out_pad // tn == 1:
        for c in (256, 128):
            if F_out_pad % c == 0 and F_out_pad // c >= 2:
                tn = c
                break

    x = source.reshape(B, F_in).astype(jnp.float32)
    x = jnp.pad(x, ((0, B_pad - B), (0, F_in_pad - F_in)))
    # Zero-padded W rows null the garbage padded columns of res; cast to bf16
    # (zeros stay exact) to halve the W HBM stream — the dominant traffic here.
    w = jnp.pad(weight.astype(jnp.float32),
                ((0, F_in_pad - F_in), (0, F_out_pad - F_out))).astype(jnp.bfloat16)
    # Fold the global-mean add into an effective bias; lane-pad to F_out_pad.
    b_eff = jnp.pad(bias.astype(jnp.float32) + src_mean,
                    (0, F_out_pad - F_out)).reshape(1, F_out_pad)

    # ---- Stage 1: conv1d + normalize -> res (bf16, HBM). ----
    # Full-F_in row strips; shrink the row-tile so the strips fit a ~24 MiB budget
    # (safe fraction of v7x's 64 MiB VMEM; plenty of slack on v5e/v6e).
    norm_budget = 24 * 1024 * 1024
    tm_norm = 16
    for c in (256, 128, 64, 32, 16):
        if c <= B_pad and B_pad % c == 0 and c * F_in_pad * 12 <= norm_budget:
            tm_norm = c
            break
    norm_vmem = int(min(48 * 1024 * 1024,
                        max(8 * 1024 * 1024, tm_norm * F_in_pad * 12 + (2 << 20))))

    res = pl.pallas_call(
        _make_norm_kernel(ks, pad),
        out_shape=jax.ShapeDtypeStruct((B_pad, F_in_pad), jnp.bfloat16),
        grid_spec=pltpu.PrefetchScalarGridSpec(
            num_scalar_prefetch=0,
            grid=(B_pad // tm_norm,),
            in_specs=[
                pl.BlockSpec(memory_space=pltpu.MemorySpace.SMEM),          # params
                pl.BlockSpec((tm_norm, F_in_pad), lambda i: (i, 0)),        # x strip
            ],
            out_specs=pl.BlockSpec((tm_norm, F_in_pad), lambda i: (i, 0)),  # res strip
        ),
        compiler_params=pltpu.CompilerParams(
            dimension_semantics=("parallel",),
            vmem_limit_bytes=norm_vmem,
        ),
        cost_estimate=pl.CostEstimate(
            flops=B_pad * F_in_pad * (2 * ks + 2),
            transcendentals=0,
            bytes_accessed=B_pad * F_in_pad * 6,
        ),
    )(params, x)

    # ---- Stage 2: tiled matmul (bf16 x bf16 -> f32) + bias. ----
    grid = (B_pad // tm, F_out_pad // tn, F_in_pad // tk)
    # res (2 bufs, bf16) + W (2 bufs, bf16) + bias (2 bufs) + out (2 bufs, f32).
    mm_vmem_est = (2 * tm * tk * 2 + 2 * tk * tn * 2 + 2 * tn * 4
                   + 2 * tm * tn * 4 + (2 << 20))
    mm_vmem = int(min(48 * 1024 * 1024, max(16 * 1024 * 1024, mm_vmem_est)))

    out = pl.pallas_call(
        _matmul_kernel,
        out_shape=jax.ShapeDtypeStruct((B_pad, F_out_pad), jnp.float32),
        grid_spec=pltpu.PrefetchScalarGridSpec(
            num_scalar_prefetch=0,
            grid=grid,
            in_specs=[
                pl.BlockSpec((tm, tk), lambda i, j, k: (i, k)),   # res tile
                pl.BlockSpec((tk, tn), lambda i, j, k: (k, j)),   # weight tile
                pl.BlockSpec((1, tn), lambda i, j, k: (0, j)),    # eff. bias tile
            ],
            out_specs=pl.BlockSpec((tm, tn), lambda i, j, k: (i, j)),
        ),
        compiler_params=pltpu.CompilerParams(
            dimension_semantics=("parallel", "parallel", "arbitrary"),
            vmem_limit_bytes=mm_vmem,
        ),
        cost_estimate=pl.CostEstimate(
            flops=2 * B_pad * F_in_pad * F_out_pad,
            transcendentals=0,
            bytes_accessed=2 * (B_pad * F_in_pad + F_in_pad * F_out_pad)
                           + 4 * (F_out_pad + B_pad * F_out_pad),
        ),
    )(res, w, b_eff)

    out = out[:B, :F_out]
    return out.reshape(B, pred_len, input_dim)


def ma_forward_reference(source, conv_w, conv_b, weight, bias, pred_len):
    """Pure-JAX reference mirroring the PyTorch module (f32 throughout)."""
    B = source.shape[0]
    input_dim = source.shape[-1]
    F_in = source.shape[1] * input_dim
    ks = conv_w.shape[0]
    pad = (ks - 1) // 2
    x = source.reshape(B, F_in)
    xp = jnp.pad(x, ((0, 0), (pad, pad)))
    mean = jnp.zeros_like(x)
    for t in range(ks):
        mean = mean + conv_w[t] * xp[:, t:t + F_in]
    mean = mean + conv_b
    res = (x - mean) / jnp.std(source, ddof=1)
    ma = (jnp.dot(res, weight, precision=jax.lax.Precision.HIGHEST)
          + bias + jnp.mean(source))
    return ma.reshape(-1, pred_len, input_dim)


if __name__ == "__main__":
    # Small shapes consistent with the module.
    B, seq_len, pred_len, input_dim = 2, 8, 8, 4
    ks = 3
    F_in = seq_len * input_dim      # 32
    F_out = pred_len * input_dim    # 32

    key = jax.random.PRNGKey(0)
    k_src, k_cw, k_cb, k_w, k_b = jax.random.split(key, 5)

    source = jax.random.normal(k_src, (B, seq_len, input_dim), dtype=jnp.float32)

    # Deterministic synthetic parameters (PyTorch-style uniform init).
    conv_bound = 1.0 / (ks ** 0.5)
    conv_w = jax.random.uniform(k_cw, (ks,), minval=-conv_bound, maxval=conv_bound,
                                dtype=jnp.float32)
    conv_b = jax.random.uniform(k_cb, (), minval=-conv_bound, maxval=conv_bound,
                                dtype=jnp.float32)
    lin_bound = 1.0 / (F_in ** 0.5)
    weight = jax.random.uniform(k_w, (F_in, F_out), minval=-lin_bound, maxval=lin_bound,
                                dtype=jnp.float32)
    bias = jax.random.uniform(k_b, (F_out,), minval=-lin_bound, maxval=lin_bound,
                              dtype=jnp.float32)

    out = ma_forward(source, conv_w, conv_b, weight, bias, pred_len)
    out = jax.block_until_ready(out)

    ref = ma_forward_reference(source, conv_w, conv_b, weight, bias, pred_len)
    assert out.shape == (B, pred_len, input_dim)
    # bf16 res/W streaming (f32 accumulation) -> slightly looser tolerance than f32.
    assert jnp.allclose(out, ref, atol=3e-2, rtol=3e-2), \
        float(jnp.max(jnp.abs(out - ref)))

    print("KERNEL_OK")
</pallas_src>

<mosaic_0001>
module attributes {stable_mosaic.version = 11 : i64} {
  func.func @kernel(%arg0: i32, %arg1: memref<5xf32, #tpu.memory_space<smem>>, %arg2: memref<16x128xf32, #tpu.memory_space<vmem>>, %arg3: memref<16x128xbf16, #tpu.memory_space<vmem>>) attributes {dimension_semantics = [#tpu.dimension_semantics<parallel>], iteration_bounds = array<i64: 1>, scalar_prefetch = 0 : i64, scratch_operands = 0 : i64, tpu.core_type = #tpu.core_type<tc>, window_params = [{transform_indices = @transform_0, window_bounds = array<i64: 5>}, {transform_indices = @transform_1, window_bounds = array<i64: 16, 128>}, {transform_indices = @transform_2, window_bounds = array<i64: 16, 128>}]} {
    %c0 = arith.constant 0 : index
    %c0_0 = arith.constant 0 : index
    %0 = vector.load %arg2[%c0, %c0_0] : memref<16x128xf32, #tpu.memory_space<vmem>>, vector<16x128xf32>
    %c0_1 = arith.constant 0 : index
    %1 = memref.load %arg1[%c0_1] : memref<5xf32, #tpu.memory_space<smem>>
    %c1_i32 = arith.constant 1 : i32
    %2 = tpu.dynamic_rotate %0 by %c1_i32 dim 1 : vector<16x128xf32>, i32 -> vector<16x128xf32>
    %3 = tpu.iota {dimensions = array<i32: 1>} : vector<16x128xi32>
    %c1_i32_2 = arith.constant 1 : i32
    %4 = vector.broadcast %c1_i32_2 : i32 to vector<16x128xi32>
    %5 = arith.cmpi slt, %3, %4 : vector<16x128xi32>
    %cst = arith.constant 0.000000e+00 : f32
    %6 = vector.broadcast %cst : f32 to vector<16x128xf32>
    %7 = arith.select %5, %6, %2 : vector<16x128xi1>, vector<16x128xf32>
    %8 = vector.broadcast %1 : f32 to vector<16x128xf32>
    %9 = arith.mulf %8, %7 : vector<16x128xf32>
    %c1 = arith.constant 1 : index
    %10 = memref.load %arg1[%c1] : memref<5xf32, #tpu.memory_space<smem>>
    %11 = vector.broadcast %10 : f32 to vector<16x128xf32>
    %12 = arith.mulf %11, %0 : vector<16x128xf32>
    %13 = arith.addf %9, %12 : vector<16x128xf32>
    %c2 = arith.constant 2 : index
    %14 = memref.load %arg1[%c2] : memref<5xf32, #tpu.memory_space<smem>>
    %c127_i32 = arith.constant 127 : i32
    %15 = tpu.dynamic_rotate %0 by %c127_i32 dim 1 : vector<16x128xf32>, i32 -> vector<16x128xf32>
    %16 = tpu.iota {dimensions = array<i32: 1>} : vector<16x128xi32>
    %c127_i32_3 = arith.constant 127 : i32
    %17 = vector.broadcast %c127_i32_3 : i32 to vector<16x128xi32>
    %18 = arith.cmpi sge, %16, %17 : vector<16x128xi32>
    %cst_4 = arith.constant 0.000000e+00 : f32
    %19 = vector.broadcast %cst_4 : f32 to vector<16x128xf32>
    %20 = arith.select %18, %19, %15 : vector<16x128xi1>, vector<16x128xf32>
    %21 = vector.broadcast %14 : f32 to vector<16x128xf32>
    %22 = arith.mulf %21, %20 : vector<16x128xf32>
    %23 = arith.addf %13, %22 : vector<16x128xf32>
    %c3 = arith.constant 3 : index
    %24 = memref.load %arg1[%c3] : memref<5xf32, #tpu.memory_space<smem>>
    %25 = vector.broadcast %24 : f32 to vector<16x128xf32>
    %26 = arith.addf %23, %25 : vector<16x128xf32>
    %27 = arith.subf %0, %26 : vector<16x128xf32>
    %c4 = arith.constant 4 : index
    %28 = memref.load %arg1[%c4] : memref<5xf32, #tpu.memory_space<smem>>
    %29 = vector.broadcast %28 : f32 to vector<16x128xf32>
    %30 = arith.mulf %27, %29 : vector<16x128xf32>
    %31 = arith.truncf %30 : vector<16x128xf32> to vector<16x128xbf16>
    %c0_5 = arith.constant 0 : index
    %c0_6 = arith.constant 0 : index
    %32 = vector.load %arg3[%c0_5, %c0_6] : memref<16x128xbf16, #tpu.memory_space<vmem>>, vector<16x128xbf16>
    tpu.vector_store %arg3[%c0_5, %c0_6], %31 {strides = array<i32>} : memref<16x128xbf16, #tpu.memory_space<vmem>>, vector<16x128xbf16>,
    return
  }
  func.func @transform_0(%arg0: i32) -> i32 {
    %c0_i32 = arith.constant 0 : i32
    %c0_i32_0 = arith.constant 0 : i32
    return %c0_i32 : i32
  }
  func.func @transform_1(%arg0: i32) -> (i32, i32) {
    %c0_i32 = arith.constant 0 : i32
    %c0_i32_0 = arith.constant 0 : i32
    return %arg0, %c0_i32 : i32, i32
  }
  func.func @transform_2(%arg0: i32) -> (i32, i32) {
    %c0_i32 = arith.constant 0 : i32
    %c0_i32_0 = arith.constant 0 : i32
    return %arg0, %c0_i32 : i32, i32
  }
}

</mosaic_0001>

<llo_original>
// kernel: tpu_custom_call.1
$region0: #{tpu_custom_call.1}
  #allocation0 [shape = 'u32[]', space=smem, size = 0x4, offset = 0x4, fixed_abs, tag = 'smem constant byte address 0x4 - core index']
  #allocation1 [shape = 'u32[144,128]{1,0:T(1,128)}', space=vmem, size = 0x12000, scoped, tag = 'internal scratch']
  %s0 = inlined_call_operand.hbm [shape: f32[5], index: 0, kind: input, shape index: {}]
  %s1 = inlined_call_operand.hbm [shape: f32[16,128], index: 1, kind: input, shape index: {}]
  %s2 = inlined_call_operand.hbm [shape: bf16[16,128], index: 2, kind: output, shape index: {}]
  %s3 = sld [smem:[#allocation0]]
  $region26: #{tpu_custom_call.1} parent=0
    _
  %s5 = ssub.s32 1, %s3
  %s6 = scalar_select 0, %s5, %s3
  $region1: #{tpu_custom_call.1} parent=0
    #allocation2 [shape = 'u8[512]{0}', space=smem, size = 0x200, scoped, tag = 'input window, operand 0, single buffered']
    #allocation3 [shape = 's32[1]{0}', space=sflag, size = 0x4, scoped, tag = 'scoped memory for tpu_custom_call.1']
    #allocation4 [shape = 's32[1]{0}', space=sflag, size = 0x4, scoped, tag = 'scoped memory for tpu_custom_call.1']
    #allocation5 [shape = 's32[1]{0}', space=sflag, size = 0x4, scoped, tag = 'scoped memory for tpu_custom_call.1']
    #allocation6 [shape = 'u8[8192]{0}', space=vmem, size = 0x2000, scoped, tag = 'input window, operand 1, single buffered']
    #allocation7 [shape = 'u8[4096]{0}', space=vmem, size = 0x1000, scoped, tag = 'output window, operand 0, single buffered']
    %7 = vsyncpa [#allocation5], 0
    %8 = vsyncpa [#allocation3], 0
    %9 = vsyncpa [#allocation4], 0
    // Predicated region
    $region2: #{tpu_custom_call.1} parent=1 // pred_check
      _
    $region3: #{tpu_custom_call.1} parent=1 // pred_check_branch
      %11 = sbr.rel (0) target = $region5
    $region4: #{tpu_custom_call.1} parent=1 // pred_region
      %s13 = ssub.s32 16, 16
      %14 = vsyncadd [#allocation5], %s13
      %17 = dma.hbm_to_smem %s0, 16, [#allocation2], [#allocation5]
    $region5: #{tpu_custom_call.1} parent=1 // pred_fallthru
      _
    // Predicated region
    $region6: #{tpu_custom_call.1} parent=1 // pred_check
      _
    $region7: #{tpu_custom_call.1} parent=1 // pred_check_branch
      %19 = sbr.rel (0) target = $region9
    $region8: #{tpu_custom_call.1} parent=1 // pred_region
      %s21 = ssub.s32 256, 256
      %22 = vsyncadd [#allocation3], %s21
      %s23 = sshll.u32 [#allocation6], 4
      %s24 = int_to_ptr.vmem [resolvable:$true] %s23
      %29 = dma.hbm_to_vmem [thread:$0]  %s1, 256, %s24, [#allocation3], 128, 128, 8
    $region9: #{tpu_custom_call.1} parent=1 // pred_fallthru
      _
    // Predicated region
    $region10: #{tpu_custom_call.1} parent=1 // pred_check
      _
    $region11: #{tpu_custom_call.1} parent=1 // pred_check_branch
      %31 = sbr.rel (0) target = $region13
    $region12: #{tpu_custom_call.1} parent=1 // pred_region
      %32 = dma.done [#allocation5], 16
    $region13: #{tpu_custom_call.1} parent=1 // pred_fallthru
      _
    // Predicated region
    $region14: #{tpu_custom_call.1} parent=1 // pred_check
      _
    $region15: #{tpu_custom_call.1} parent=1 // pred_check_branch
      %34 = sbr.rel (0) target = $region17
    $region16: #{tpu_custom_call.1} parent=1 // pred_region
      %35 = dma.done [#allocation3], 256
    $region17: #{tpu_custom_call.1} parent=1 // pred_fallthru
      _
    %36 = sfence
    %v37 = vld [vmem:[#allocation6] sm:$0xff]
    %v38 = vld [vmem:[#allocation6 + $0x8] sm:$0xff]
    %s39 = sld [smem:[#allocation2]]
    %40 = vrot.lane.b32.xlu0 %v37, 1
    %v41 = vpop.permute.xlu0 %40
    %42 = vrot.lane.b32.xlu0 %v38, 1
    %v43 = vpop.permute.xlu0 %42
    %v44 = vlaneseq
    %v45 = vand.u32 %v44, 127
    %vm46 = vcmp.lt.s32.totalorder %v45, 1
    %v47 = vsel %vm46, 0.0, %v41
    %v48 = vsel %vm46, 0.0, %v43
    %v49 = vstv %s39
    %v50 = vmul.f32 %v49, %v47
    %v51 = vmul.f32 %v49, %v48
    %s52 = sld [smem:[#allocation2 + $0x1]]
    %v53 = vstv %s52
    %v54 = vmul.f32 %v53, %v37
    %v55 = vmul.f32 %v53, %v38
    %v56 = vadd.f32 %v50, %v54
    %v57 = vadd.f32 %v51, %v55
    %s58 = sld [smem:[#allocation2 + $0x2]]
    %59 = vrot.lane.b32.xlu0 %v37, 127
    %v60 = vpop.permute.xlu0 %59
    %61 = vrot.lane.b32.xlu0 %v38, 127
    %v62 = vpop.permute.xlu0 %61
    %vm63 = vcmp.ge.s32.totalorder %v45, 127
    %v64 = vsel %vm63, 0.0, %v60
    %v65 = vsel %vm63, 0.0, %v62
    %v66 = vstv %s58
    %v67 = vmul.f32 %v66, %v64
    %v68 = vmul.f32 %v66, %v65
    %v69 = vadd.f32 %v56, %v67
    %v70 = vadd.f32 %v57, %v68
    %s71 = sld [smem:[#allocation2 + $0x3]]
    %v72 = vstv %s71
    %v73 = vadd.f32 %v69, %v72
    %v74 = vadd.f32 %v70, %v72
    %v75 = vsub.f32 %v37, %v73
    %v76 = vsub.f32 %v38, %v74
    %s77 = sld [smem:[#allocation2 + $0x4]]
    %v78 = vstv %s77
    %v79 = vmul.f32 %v75, %v78
    %v80 = vmul.f32 %v76, %v78
    %v81 = vpack.c.bf16 %v80, %v79
    %v83 = vunpack.c.l.b16 %v81
    %v84 = vunpack.c.h.b16 %v81
    %v85 = vpack.c.b16 %v83, %v83
    %v86 = vpack.c.b16 %v84, %v84
    %89 = vst [vmem:[#allocation7] sm:$0xf] %v85
    %90 = vst [vmem:[#allocation7 + $0x4] sm:$0xf] %v86
    // Predicated region
    $region18: #{tpu_custom_call.1} parent=1 // pred_check
      _
    $region19: #{tpu_custom_call.1} parent=1 // pred_check_branch
      %92 = sbr.rel (0) target = $region21
    $region20: #{tpu_custom_call.1} parent=1 // pred_region
      %s94 = ssub.s32 128, 128
      %95 = vsyncadd [#allocation4], %s94
      %s96 = sshll.u32 [#allocation7], 4
      %s97 = int_to_ptr.vmem [resolvable:$true] %s96
      %102 = dma.vmem_to_hbm [thread:$0]  %s97, 128, %s2, [#allocation4], 64, 64, 4
    $region21: #{tpu_custom_call.1} parent=1 // pred_fallthru
      _
    // Predicated region
    $region22: #{tpu_custom_call.1} parent=1 // pred_check
      _
    $region23: #{tpu_custom_call.1} parent=1 // pred_check_branch
      %104 = sbr.rel (0) target = $region25
    $region24: #{tpu_custom_call.1} parent=1 // pred_region
      %105 = dma.done [#allocation4], 128
    $region25: #{tpu_custom_call.1} parent=1 // pred_fallthru
      _
    %106 = vsyncpa [#allocation3], 1
    %107 = vsyncpa [#allocation4], 1
    %108 = vsyncpa [#allocation5], 1

</llo_original>
